<compile_context>
chip_gen: v6e
topology: v6e:2x2x1
jax: 0.10.0
libtpu: 0.0.40
codegen_flags: <defaults>
</compile_context>

<pallas_src>
import functools

import numpy as np
import jax
import jax.numpy as jnp
from jax.experimental import pallas as pl
from jax.experimental.pallas import tpu as pltpu


def _round_up(v, m):
    return (v + m - 1) // m * m


def _pick_tiles(n, tm, tk):
    """Clamp tiles for small graphs; keep tm | tk so one Npad serves both axes."""
    np128 = _round_up(max(n, 1), 128)
    tk = min(tk, np128)
    tm = min(tm, tk)
    tk = _round_up(tk, tm)
    npad = _round_up(n, tk)
    return tm, tk, npad


# ---------------------------------------------------------------------------
# Kernel 1: fused node scoring (VPU/XLU/EUP, no MXU) + augmented operand prep
# ---------------------------------------------------------------------------
def _score_prep_kernel(x_ref, w_ref, score_ref, xs_ref, *, c_true):
    x = x_ref[...]                                      # [ts, Caug] f32
    w = w_ref[...]                                      # [1,  Caug] f32
    logits = jnp.sum(x * w, axis=-1, keepdims=True)     # VPU mul + XLU reduce

    # numerically stable sigmoid; division via EUP approximate reciprocal
    z = jnp.exp(-jnp.abs(logits))
    sig = jnp.where(logits >= 0.0, 1.0, z) * pl.reciprocal(1.0 + z, approx=True)

    # lane-dense score output (full 128-lane rows -> unmasked vector stores)
    score_ref[...] = jnp.broadcast_to(sig, score_ref.shape)

    # augmented operand: cols [0, C) = x * score, col C = score^2, rest = 0
    lane = jax.lax.broadcasted_iota(jnp.int32, x.shape, 1)
    aug = jnp.where(lane == c_true, sig * sig, x * sig)
    xs_ref[...] = aug.astype(jnp.bfloat16)


def score_and_prep_pallas(x_pad, w_pad, c_true, *, ts):
    npad, caug = x_pad.shape
    kernel = functools.partial(_score_prep_kernel, c_true=c_true)
    return pl.pallas_call(
        kernel,
        out_shape=(jax.ShapeDtypeStruct((npad, 128), jnp.float32),
                   jax.ShapeDtypeStruct((npad, caug), jnp.bfloat16)),
        grid=(npad // ts,),
        in_specs=[pl.BlockSpec((ts, caug), lambda i: (i, 0)),
                  pl.BlockSpec((1, caug), lambda i: (0, 0))],
        out_specs=(pl.BlockSpec((ts, 128), lambda i: (i, 0)),
                   pl.BlockSpec((ts, caug), lambda i: (i, 0))),
        compiler_params=pltpu.CompilerParams(
            dimension_semantics=("parallel",),
            vmem_limit_bytes=48 * 1024 * 1024),
    )(x_pad, w_pad)


# ---------------------------------------------------------------------------
# Kernel 2: tiled scatter-sum pooling via bf16 one-hot matmul (fused norm)
#   out[k, :C] = sum_{i : cluster[i]==k} x[i, :] * score[i]
#   out[k,  C] = sum_{i : cluster[i]==k} score[i]^2
# ---------------------------------------------------------------------------
def _pool_kernel(cl_ref, xs_ref, o_ref, acc_ref):
    k = pl.program_id(1)

    @pl.when(k == 0)
    def _init():
        acc_ref[...] = jnp.zeros_like(acc_ref)

    tm = acc_ref.shape[0]
    tk = xs_ref.shape[0]
    row0 = pl.program_id(0) * tm
    rows = jax.lax.broadcasted_iota(jnp.int32, (tm, tk), 0) + row0
    onehot = jnp.where(rows == cl_ref[...], 1.0, 0.0).astype(jnp.bfloat16)
    acc_ref[...] += jnp.dot(onehot, xs_ref[...],
                            preferred_element_type=jnp.float32)

    @pl.when(k == pl.num_programs(1) - 1)
    def _store():
        o_ref[...] = acc_ref[...]


def pool_pallas(xs_aug, cluster_pad, *, tm, tk):
    npad, caug = xs_aug.shape
    grid = (npad // tm, npad // tk)
    flops = 2 * npad * npad * caug
    bytes_accessed = (grid[0] * npad * caug * 2   # xs re-read per cluster tile
                      + grid[0] * npad * 4        # cluster ids
                      + npad * caug * 4)          # output
    return pl.pallas_call(
        _pool_kernel,
        out_shape=jax.ShapeDtypeStruct((npad, caug), jnp.float32),
        grid_spec=pltpu.PrefetchScalarGridSpec(
            num_scalar_prefetch=0,
            grid=grid,
            in_specs=[pl.BlockSpec((1, tk), lambda i, k: (0, k)),
                      pl.BlockSpec((tk, caug), lambda i, k: (k, 0))],
            out_specs=pl.BlockSpec((tm, caug), lambda i, k: (i, 0)),
            scratch_shapes=[pltpu.VMEM((tm, caug), jnp.float32)]),
        compiler_params=pltpu.CompilerParams(
            dimension_semantics=("parallel", "arbitrary"),
            vmem_limit_bytes=48 * 1024 * 1024),
        cost_estimate=pl.CostEstimate(flops=flops, transcendentals=0,
                                      bytes_accessed=bytes_accessed),
    )(cluster_pad, xs_aug)


# ---------------------------------------------------------------------------
# Host-side graph utilities (sequential / data-dependent shapes).
# ---------------------------------------------------------------------------
# TODO(synk): greedy maximal matching is an inherently sequential graph
# algorithm with data-dependent control flow; no clean Pallas equivalent.
def _maximal_matching(row, col, rank, n):
    e = row.shape[0]
    pri = np.minimum(rank[row], rank[col])
    sec = np.maximum(rank[row], rank[col])
    order = np.lexsort((np.arange(e), sec, pri))
    matched = np.zeros(n, dtype=bool)
    match = np.zeros(e, dtype=bool)
    for idx in order:
        u, v = int(row[idx]), int(col[idx])
        if u != v and not matched[u] and not matched[v]:
            match[idx] = True
            matched[u] = True
            matched[v] = True
    return match


def _cluster_matching(row, col, rank, n):
    match = _maximal_matching(row, col, rank, n)
    clusters = np.arange(n, dtype=np.int64)
    clusters[col[match]] = row[match]
    _, clusters = np.unique(clusters, return_inverse=True)
    return clusters, match


# ---------------------------------------------------------------------------
# Full forward pass (default EdgePooling config).
# ---------------------------------------------------------------------------
def edge_pooling_forward(x, edge_index, w, edge_attr=None, batch=None, *,
                         tm=256, tk=512):
    n, c_feat = x.shape
    caug = _round_up(c_feat + 1, 128)       # room for the fused score^2 column
    tm, tk, npad = _pick_tiles(n, tm, tk)

    # pad once; padded rows / lanes are zero (padded rows get sigmoid(0)=0.5
    # but land in the sentinel cluster below and are sliced off)
    x_pad = jnp.zeros((npad, caug), jnp.float32)
    x_pad = x_pad.at[:n, :c_feat].set(x.astype(jnp.float32))
    w_pad = jnp.zeros((1, caug), jnp.float32)
    w_pad = w_pad.at[0, :c_feat].set(jnp.reshape(w, (-1,)).astype(jnp.float32))

    # --- fused scoring + operand prep (Pallas) -------------------------------
    score_slab, xs_aug = score_and_prep_pallas(x_pad, w_pad, c_feat, ts=tk)
    score = score_slab[:n, :1]                       # [N, 1] f32 (returned)

    # --- build coo (mimic SparseTensor.from_edge_index: sort by (row, col)) --
    row_np = np.asarray(edge_index[0], dtype=np.int64)
    col_np = np.asarray(edge_index[1], dtype=np.int64)
    perm = np.lexsort((col_np, row_np))
    row_np, col_np = row_np[perm], col_np[perm]
    if edge_attr is None:
        val_np = np.ones(row_np.shape[0], dtype=np.float32)
    else:
        val_np = np.asarray(edge_attr, dtype=np.float32)[perm]

    # --- ranking (descending=False -> ascending score = best rank) -----------
    score_np = np.asarray(score)[:, 0]               # only the [N] vector crosses
    order = np.argsort(score_np, kind="stable")
    rank = np.empty(n, dtype=np.int64)
    rank[order] = np.arange(n)

    # --- matching + clustering (host) -----------------------------------------
    clusters, match = _cluster_matching(row_np, col_np, rank, n)
    c = int(clusters.max()) + 1

    # --- pooled features + pseudoinverse norm: ONE fused Pallas matmul --------
    # padded node columns get the sentinel id npad-1 (>= c) so they only ever
    # accumulate into sliced-off output rows.
    cluster_pad = np.full((1, npad), npad - 1, dtype=np.int32)
    cluster_pad[0, :n] = clusters
    pooled = pool_pallas(xs_aug, jnp.asarray(cluster_pad), tm=tm, tk=tk)
    x_pool = pooled[:c, :c_feat]                     # [c, C]
    norm = pooled[:c, c_feat:c_feat + 1]             # [c, 1]

    # invariant: sigmoid(.) > 0 and every cluster has >= 1 node => norm > 0
    cluster_j = jnp.asarray(clusters.astype(np.int32))
    norm_score = score / norm[cluster_j]             # [N, 1]
    ns = np.asarray(norm_score)[:, 0]
    new_val = ns[row_np] * val_np * ns[col_np]

    # --- coalesce pooled adjacency (reduce_edge='sum') -------------------------
    crow = clusters[row_np]
    ccol = clusters[col_np]
    key = crow * c + ccol
    uniq, inv = np.unique(key, return_inverse=True)
    coal_val = np.zeros(uniq.shape[0], dtype=np.float32)
    np.add.at(coal_val, inv, new_val)
    new_edge_index = jnp.asarray(np.stack([uniq // c, uniq % c]).astype(np.int32))
    new_edge_attr = jnp.asarray(coal_val)

    # --- batch remap -----------------------------------------------------------
    if batch is not None:
        batch_np = np.asarray(batch)
        c_batch = np.empty(c, dtype=batch_np.dtype)
        c_batch[clusters] = batch_np
        batch = jnp.asarray(c_batch)

    return (x_pool, new_edge_index, new_edge_attr, batch,
            jnp.asarray(clusters.astype(np.int32)), jnp.asarray(match), score)


# ---------------------------------------------------------------------------
if __name__ == "__main__":
    N, C = 300, 48   # small, but large enough to exercise a multi-tile pool grid

    key = jax.random.PRNGKey(0)
    kx, kw = jax.random.split(key)
    x = jax.random.normal(kx, (N, C), dtype=jnp.float32)
    # Linear(C, 1, bias=False) default init: U(-1/sqrt(C), 1/sqrt(C))
    bound = 1.0 / np.sqrt(C)
    w = jax.random.uniform(kw, (C, 1), dtype=jnp.float32, minval=-bound, maxval=bound)

    # deterministic graph: bidirectional ring + a few chords
    src = np.arange(N)
    dst = (src + 1) % N
    chord_src = np.arange(0, N, 3)
    chord_dst = (chord_src + 7) % N
    row = np.concatenate([src, dst, chord_src])
    col = np.concatenate([dst, src, chord_dst])
    edge_index = jnp.asarray(np.stack([row, col]).astype(np.int32))

    # tm=tk=128 forces grid=(3, 3) with Npad=384 -> exercises accumulation,
    # megacore semantics and the sentinel-cluster padding path.
    outs = edge_pooling_forward(x, edge_index, w, edge_attr=None, batch=None,
                                tm=128, tk=128)
    x_pool, new_ei, new_ea, batch_out, cluster, match, score = outs
    jax.block_until_ready((x_pool, new_ei, new_ea, cluster, score))

    # --- lightweight numeric check against a pure-numpy reference -------------
    x_np = np.asarray(x, dtype=np.float32)
    w_np = np.asarray(w, dtype=np.float32).reshape(-1)
    score_np = np.asarray(score)[:, 0]
    score_ref = 1.0 / (1.0 + np.exp(-(x_np @ w_np)))
    assert np.max(np.abs(score_np - score_ref)) < 2e-2, "score mismatch"

    cl_np = np.asarray(cluster)
    c = int(cl_np.max()) + 1
    xp_ref = np.zeros((c, C), np.float32)
    np.add.at(xp_ref, cl_np, x_np * score_np[:, None])
    np.testing.assert_allclose(np.asarray(x_pool), xp_ref, rtol=5e-2, atol=5e-2)

    assert x_pool.shape == (c, C)
    assert score.shape == (N, 1)
    assert new_ei.shape[0] == 2 and new_ea.shape[0] == new_ei.shape[1]
    print("KERNEL_OK")
</pallas_src>

<mosaic_0001>
module attributes {stable_mosaic.version = 11 : i64} {
  func.func @_score_prep_kernel(%arg0: i32, %arg1: memref<128x128xf32, #tpu.memory_space<vmem>>, %arg2: memref<1x128xf32, #tpu.memory_space<vmem>>, %arg3: memref<128x128xf32, #tpu.memory_space<vmem>>, %arg4: memref<128x128xbf16, #tpu.memory_space<vmem>>) attributes {dimension_semantics = [#tpu.dimension_semantics<parallel>], iteration_bounds = array<i64: 3>, scalar_prefetch = 0 : i64, scratch_operands = 0 : i64, tpu.core_type = #tpu.core_type<tc>, window_params = [{transform_indices = @transform_0, window_bounds = array<i64: 128, 128>}, {pipeline_mode = #tpu.pipeline_mode<synchronous>, transform_indices = @transform_1, window_bounds = array<i64: 1, 128>}, {transform_indices = @transform_2, window_bounds = array<i64: 128, 128>}, {transform_indices = @transform_3, window_bounds = array<i64: 128, 128>}]} {
    %c0 = arith.constant 0 : index
    %c0_0 = arith.constant 0 : index
    %0 = vector.load %arg1[%c0, %c0_0] : memref<128x128xf32, #tpu.memory_space<vmem>>, vector<128x128xf32>
    %c0_1 = arith.constant 0 : index
    %c0_2 = arith.constant 0 : index
    %1 = vector.load %arg2[%c0_1, %c0_2] : memref<1x128xf32, #tpu.memory_space<vmem>>, vector<1x128xf32>
    %2 = vector.broadcast %1 : vector<1x128xf32> to vector<128x128xf32>
    %3 = arith.mulf %0, %2 : vector<128x128xf32>
    %cst = arith.constant dense<0.000000e+00> : vector<128xf32>
    %4 = vector.multi_reduction <add>, %3, %cst [1] : vector<128x128xf32> to vector<128xf32>
    %5 = vector.shape_cast %4 : vector<128xf32> to vector<128x1xf32>
    %6 = math.absf %5 : vector<128x1xf32>
    %cst_3 = arith.constant 0.000000e+00 : f32
    %7 = vector.broadcast %cst_3 : f32 to vector<128x1xf32>
    %8 = arith.subf %7, %6 : vector<128x1xf32>
    %9 = math.exp %8 : vector<128x1xf32>
    %cst_4 = arith.constant 0.000000e+00 : f32
    %10 = vector.broadcast %cst_4 : f32 to vector<128x1xf32>
    %11 = arith.cmpf oge, %5, %10 : vector<128x1xf32>
    %cst_5 = arith.constant 1.000000e+00 : f32
    %12 = vector.broadcast %cst_5 : f32 to vector<128x1xf32>
    %13 = arith.select %11, %12, %9 : vector<128x1xi1>, vector<128x1xf32>
    %cst_6 = arith.constant 1.000000e+00 : f32
    %14 = vector.broadcast %cst_6 : f32 to vector<128x1xf32>
    %15 = arith.addf %14, %9 : vector<128x1xf32>
    %16 = tpu.reciprocal %15 {approx = true} : vector<128x1xf32> -> vector<128x1xf32>
    %17 = arith.mulf %13, %16 : vector<128x1xf32>
    %18 = vector.shape_cast %17 : vector<128x1xf32> to vector<128x1xf32>
    %19 = vector.broadcast %18 : vector<128x1xf32> to vector<128x128xf32>
    %c0_7 = arith.constant 0 : index
    %c0_8 = arith.constant 0 : index
    %20 = vector.load %arg3[%c0_7, %c0_8] : memref<128x128xf32, #tpu.memory_space<vmem>>, vector<128x128xf32>
    tpu.vector_store %arg3[%c0_7, %c0_8], %19 {strides = array<i32>} : memref<128x128xf32, #tpu.memory_space<vmem>>, vector<128x128xf32>,
    %21 = tpu.iota {dimensions = array<i32: 1>} : vector<128x128xi32>
    %c48_i32 = arith.constant 48 : i32
    %22 = vector.broadcast %c48_i32 : i32 to vector<128x128xi32>
    %23 = arith.cmpi eq, %21, %22 : vector<128x128xi32>
    %24 = arith.mulf %17, %17 : vector<128x1xf32>
    %25 = vector.broadcast %17 : vector<128x1xf32> to vector<128x128xf32>
    %26 = arith.mulf %0, %25 : vector<128x128xf32>
    %27 = vector.shape_cast %24 : vector<128x1xf32> to vector<128x1xf32>
    %28 = vector.broadcast %27 : vector<128x1xf32> to vector<128x128xf32>
    %29 = arith.select %23, %28, %26 : vector<128x128xi1>, vector<128x128xf32>
    %30 = arith.truncf %29 : vector<128x128xf32> to vector<128x128xbf16>
    %c0_9 = arith.constant 0 : index
    %c0_10 = arith.constant 0 : index
    %31 = vector.load %arg4[%c0_9, %c0_10] : memref<128x128xbf16, #tpu.memory_space<vmem>>, vector<128x128xbf16>
    tpu.vector_store %arg4[%c0_9, %c0_10], %30 {strides = array<i32>} : memref<128x128xbf16, #tpu.memory_space<vmem>>, vector<128x128xbf16>,
    return
  }
  func.func @transform_0(%arg0: i32) -> (i32, i32) {
    %c0_i32 = arith.constant 0 : i32
    %c0_i32_0 = arith.constant 0 : i32
    return %arg0, %c0_i32 : i32, i32
  }
  func.func @transform_1(%arg0: i32) -> (i32, i32) {
    %c0_i32 = arith.constant 0 : i32
    %c0_i32_0 = arith.constant 0 : i32
    %c0_i32_1 = arith.constant 0 : i32
    return %c0_i32, %c0_i32_0 : i32, i32
  }
  func.func @transform_2(%arg0: i32) -> (i32, i32) {
    %c0_i32 = arith.constant 0 : i32
    %c0_i32_0 = arith.constant 0 : i32
    return %arg0, %c0_i32 : i32, i32
  }
  func.func @transform_3(%arg0: i32) -> (i32, i32) {
    %c0_i32 = arith.constant 0 : i32
    %c0_i32_0 = arith.constant 0 : i32
    return %arg0, %c0_i32 : i32, i32
  }
}

</mosaic_0001>

<llo_original>
// kernel: tpu_custom_call.1
$region0: #{tpu_custom_call.1}
  #allocation0 [shape = 'u32[]', space=smem, size = 0x4, offset = 0x4, fixed_abs, tag = 'smem constant byte address 0x4 - core index']
  #allocation1 [shape = 'u32[144,128]{1,0:T(1,128)}', space=vmem, size = 0x12000, scoped, tag = 'internal scratch']
  %s0 = inlined_call_operand.hbm [shape: f32[384,128], index: 0, kind: input, shape index: {}]
  %s1 = inlined_call_operand.vmem [shape: f32[1,128], index: 1, kind: input, shape index: {}]
  %s2 = inlined_call_operand.hbm [shape: f32[384,128], index: 2, kind: output, shape index: {0}]
  %s3 = inlined_call_operand.hbm [shape: bf16[384,128], index: 3, kind: output, shape index: {1}]
  %4 = xla_tuple %s2, %s3
  %s5 = sld [smem:[#allocation0]]
  $region53: #{tpu_custom_call.1} parent=0
    _
  %s7 = ssub.s32 1, %s5
  %s8 = scalar_select 0, %s7, %s5
  $region1: #{tpu_custom_call.1} parent=0
    #allocation2 [shape = 'u8[131072]{0}', space=vmem, size = 0x20000, scoped, tag = 'input window, operand 0']
    #allocation3 [shape = 's32[2]{0}', space=sflag, size = 0x8, scoped, tag = 'scoped memory for tpu_custom_call.1']
    #allocation4 [shape = 's32[2]{0}', space=sflag, size = 0x8, scoped, tag = 'scoped memory for tpu_custom_call.1']
    #allocation5 [shape = 'u8[131072]{0}', space=vmem, size = 0x20000, scoped, tag = 'output window, operand 0']
    #allocation6 [shape = 'u8[65536]{0}', space=vmem, size = 0x10000, scoped, tag = 'output window, operand 1']
    #allocation7 [shape = 's32[2]{0}', space=sflag, size = 0x8, scoped, tag = 'scoped memory for tpu_custom_call.1']
    %9 = vsyncpa [#allocation3], 0
    %s10 = scalar_lea.sflag [#allocation3], 1
    %11 = vsyncpa %s10, 0
    %12 = vsyncpa [#allocation4], 0
    %s13 = scalar_lea.sflag [#allocation4], 1
    %14 = vsyncpa %s13, 0
    %15 = vsyncpa [#allocation7], 0
    %s16 = scalar_lea.sflag [#allocation7], 1
    %17 = vsyncpa %s16, 0
    loop: start=0, step=1, limit=5
    $region2: #{tpu_custom_call.1} parent=1 // loop_pre_header
      _
    $region3: #{tpu_custom_call.1} parent=1 // loop_header
      %s19 = sphi 0, %s23
      %p20 = scmp.ge.s32.totalorder %s19, 5
      %s29 = sphi 0, %s31
      %s32 = sphi 0, %s29
      %s33 = sphi 0, %s32
      %s49 = sphi 0, %s33
      %s53 = sphi 0, %s53
      %s55 = sphi 0, %s53
      %s56 = sphi 0, %s55
      %s70 = sphi 0, %s56
      %s76 = sphi 0, %s78
      %s79 = sphi 0, %s76
      %s80 = sphi 0, %s79
      %s96 = sphi 0, %s80
      %s102 = sphi 0, %s104
      %s105 = sphi 0, %s102
      %s106 = sphi 0, %s105
      %s122 = sphi 0, %s106
    $region4: #{tpu_custom_call.1} parent=1 // loop_header_branch
      %22 = sbr.rel (%p20) target = $region8
    $region5: #{tpu_custom_call.1} parent=1 // loop_body
      %s24 = ssub.s32 %s19, 1
      %s25 = ssub.s32 %s19, 2
      %s26 = sadd.s32 %s19, 1
      %s27 = ssub.s32 %s19, %s26
      %p28 = scmp.eq.s32.totalorder %s27, 0
      %s30 = sadd.s32 %s29, 1
      %s31 = scalar_select %p28, %s29, %s30
      %p34 = pneg %p28
      %p35 = scmp.eq.s32.totalorder %s19, 2
      %p36 = por %p34, %p35
      %p37 = scmp.ne.s32.totalorder %s29, %s32
      %p38 = scmp.eq.s32.totalorder %s19, 0
      %p39 = por %p37, %p38
      %p40 = scmp.ne.s32.totalorder %s29, %s32
      %p41 = scmp.eq.s32.totalorder %s24, 2
      %p42 = por %p40, %p41
      %p43 = scmp.ne.s32.totalorder %s32, %s33
      %p44 = scmp.eq.s32.totalorder %s24, 0
      %p45 = por %p43, %p44
      %p46 = scmp.ne.s32.totalorder %s32, %s33
      %p47 = scmp.eq.s32.totalorder %s25, 2
      %p48 = por %p46, %p47
      %p50 = scmp.ne.s32.totalorder %s33, %s49
      %p51 = scmp.eq.s32.totalorder %s25, 0
      %p52 = por %p50, %p51
      %s54 = sadd.s32 %s53, 1
      %p57 = scmp.eq.s32.totalorder %s19, 2
      %p58 = scmp.ne.s32.totalorder %s53, %s55
      %p59 = scmp.eq.s32.totalorder %s19, 0
      %p60 = por %p58, %p59
      %p61 = scmp.ne.s32.totalorder %s53, %s55
      %p62 = scmp.eq.s32.totalorder %s24, 2
      %p63 = por %p61, %p62
      %p64 = scmp.ne.s32.totalorder %s55, %s56
      %p65 = scmp.eq.s32.totalorder %s24, 0
      %p66 = por %p64, %p65
      %p67 = scmp.ne.s32.totalorder %s55, %s56
      %p68 = scmp.eq.s32.totalorder %s25, 2
      %p69 = por %p67, %p68
      %p71 = scmp.ne.s32.totalorder %s56, %s70
      %p72 = scmp.eq.s32.totalorder %s25, 0
      %p73 = por %p71, %p72
      %s74 = ssub.s32 %s19, %s26
      %p75 = scmp.eq.s32.totalorder %s74, 0
      %s77 = sadd.s32 %s76, 1
      %s78 = scalar_select %p75, %s76, %s77
      %p81 = pneg %p75
      %p82 = scmp.eq.s32.totalorder %s19, 2
      %p83 = por %p81, %p82
      %p84 = scmp.ne.s32.totalorder %s76, %s79
      %p85 = scmp.eq.s32.totalorder %s19, 0
      %p86 = por %p84, %p85
      %p87 = scmp.ne.s32.totalorder %s76, %s79
      %p88 = scmp.eq.s32.totalorder %s24, 2
      %p89 = por %p87, %p88
      %p90 = scmp.ne.s32.totalorder %s79, %s80
      %p91 = scmp.eq.s32.totalorder %s24, 0
      %p92 = por %p90, %p91
      %p93 = scmp.ne.s32.totalorder %s79, %s80
      %p94 = scmp.eq.s32.totalorder %s25, 2
      %p95 = por %p93, %p94
      %p97 = scmp.ne.s32.totalorder %s80, %s96
      %p98 = scmp.eq.s32.totalorder %s25, 0
      %p99 = por %p97, %p98
      %s100 = ssub.s32 %s19, %s26
      %p101 = scmp.eq.s32.totalorder %s100, 0
      %s103 = sadd.s32 %s102, 1
      %s104 = scalar_select %p101, %s102, %s103
      %p107 = pneg %p101
      %p108 = scmp.eq.s32.totalorder %s19, 2
      %p109 = por %p107, %p108
      %p110 = scmp.ne.s32.totalorder %s102, %s105
      %p111 = scmp.eq.s32.totalorder %s19, 0
      %p112 = por %p110, %p111
      %p113 = scmp.ne.s32.totalorder %s102, %s105
      %p114 = scmp.eq.s32.totalorder %s24, 2
      %p115 = por %p113, %p114
      %p116 = scmp.ne.s32.totalorder %s105, %s106
      %p117 = scmp.eq.s32.totalorder %s24, 0
      %p118 = por %p116, %p117
      %p119 = scmp.ne.s32.totalorder %s105, %s106
      %p120 = scmp.eq.s32.totalorder %s25, 2
      %p121 = por %p119, %p120
      %p123 = scmp.ne.s32.totalorder %s106, %s122
      %p124 = scmp.eq.s32.totalorder %s25, 0
      %p125 = por %p123, %p124
      %p126 = scmp.le.s32.totalorder 1, %s19
      %p127 = scmp.lt.s32.totalorder %s19, 4
      %p128 = pnand %p126, %p127
      %p129 = pneg %p128
      // Predicated region
      $region9: #{tpu_custom_call.1} parent=5 // pred_check
        _
      $region10: #{tpu_custom_call.1} parent=5 // pred_check_branch
        %131 = sbr.rel (%p128) target = $region12
      $region11: #{tpu_custom_call.1} parent=5 // pred_region
        %s132 = ssub.s32 %s19, 1
        // Predicated region
        $region13: #{tpu_custom_call.1} parent=11 // pred_check
          %p133 = pneg %p66
        $region14: #{tpu_custom_call.1} parent=11 // pred_check_branch
          %135 = sbr.rel (%p133) target = $region16
        $region15: #{tpu_custom_call.1} parent=11 // pred_region
          _
        $region16: #{tpu_custom_call.1} parent=11 // pred_fallthru
          _
      $region12: #{tpu_custom_call.1} parent=5 // pred_fallthru
        _
      %p136 = scmp.lt.s32.totalorder %s19, 3
      // Predicated region
      $region17: #{tpu_custom_call.1} parent=5 // pred_check
        %p137 = pneg %p136
      $region18: #{tpu_custom_call.1} parent=5 // pred_check_branch
        %139 = sbr.rel (%p137) target = $region20
      $region19: #{tpu_custom_call.1} parent=5 // pred_region
        // Predicated region
        $region21: #{tpu_custom_call.1} parent=19 // pred_check
          %p140 = pneg %p39
        $region22: #{tpu_custom_call.1} parent=19 // pred_check_branch
          %142 = sbr.rel (%p140) target = $region24
        $region23: #{tpu_custom_call.1} parent=19 // pred_region
          %s143 = sand.u32 %s29, 1
          %s144 = scalar_lea.sflag [#allocation3], %s143
          %s145 = sand.u32 %s29, 1
          %s146 = smul.addr %s145, 128
          %s147 = scalar_lea.vmem [#allocation2], %s146
          %s148 = smul.u32 16, %s19
          %s150 = ssub.s32 2048, 2048
          %151 = vsyncadd %s144, %s150
          %s152 = smul.addr %s148, 128
          %s153 = scalar_lea.hbm %s0, %s152
          %s154 = sshll.u32 %s147, 4
          %s155 = int_to_ptr.vmem [resolvable:$true] %s154
          %160 = dma.hbm_to_vmem [thread:$0]  %s153, 2048, %s155, %s144, 128, 128, 8
        $region24: #{tpu_custom_call.1} parent=19 // pred_fallthru
          _
      $region20: #{tpu_custom_call.1} parent=5 // pred_fallthru
        _
      %p161 = scmp.le.s32.totalorder 1, %s19
      %p162 = scmp.lt.s32.totalorder %s19, 4
      %p163 = pnand %p161, %p162
      %p164 = pneg %p163
      // Predicated region
      $region25: #{tpu_custom_call.1} parent=5 // pred_check
        _
      $region26: #{tpu_custom_call.1} parent=5 // pred_check_branch
        %166 = sbr.rel (%p163) target = $region28
      $region27: #{tpu_custom_call.1} parent=5 // pred_region
        %s167 = ssub.s32 %s19, 1
        %s168 = sand.u32 %s32, 1
        %s169 = scalar_lea.sflag [#allocation3], %s168
        %s170 = sand.u32 %s32, 1
        %s171 = smul.addr %s170, 128
        %s172 = scalar_lea.vmem [#allocation2], %s171
        // Predicated region
        $region29: #{tpu_custom_call.1} parent=27 // pred_check
          %p173 = pneg %p45
        $region30: #{tpu_custom_call.1} parent=27 // pred_check_branch
          %175 = sbr.rel (%p173) target = $region32
        $region31: #{tpu_custom_call.1} parent=27 // pred_region
          %176 = dma.done %s169, 2048
        $region32: #{tpu_custom_call.1} parent=27 // pred_fallthru
          _
        %s177 = sand.u32 %s32, 1
        %s178 = scalar_lea.sflag [#allocation3], %s177
        %s179 = sand.u32 %s32, 1
        %s180 = smul.addr %s179, 128
        %s181 = scalar_lea.vmem [#allocation2], %s180
        %p182 = pneg %p45
        %p183 = pneg %p42
        %p184 = pneg %p66
        %p185 = pneg %p63
        %p186 = pneg %p92
        %p187 = pneg %p89
        %s188 = sand.u32 %s79, 1
        %s189 = scalar_lea.sflag [#allocation4], %s188
        %s190 = sand.u32 %s79, 1
        %s191 = smul.addr %s190, 128
        %s192 = scalar_lea.vmem [#allocation5], %s191
        %p193 = pneg %p118
        %p194 = pneg %p115
        %s195 = sand.u32 %s105, 1
        %s196 = scalar_lea.sflag [#allocation7], %s195
        %s197 = sand.u32 %s105, 1
        %s198 = smul.addr %s197, 64
        %s199 = scalar_lea.vmem [#allocation6], %s198
        %s200 = smul.u32 16, %s24
        %s201 = smul.u32 16, %s24
        %s202 = smul.u32 16, %s24
        %v203 = vld [vmem:[%s172] sm:$0xff]
        %v204 = vld [vmem:[%s172 + $0x8] sm:$0xff]
        %v205 = vld [vmem:[%s172 + $0x10] sm:$0xff]
        %v206 = vld [vmem:[%s172 + $0x18] sm:$0xff]
        %v207 = vld [vmem:[%s172 + $0x20] sm:$0xff]
        %v208 = vld [vmem:[%s172 + $0x28] sm:$0xff]
        %v209 = vld [vmem:[%s172 + $0x30] sm:$0xff]
        %v210 = vld [vmem:[%s172 + $0x38] sm:$0xff]
        %v211 = vld [vmem:[%s172 + $0x40] sm:$0xff]
        %v212 = vld [vmem:[%s172 + $0x48] sm:$0xff]
        %v213 = vld [vmem:[%s172 + $0x50] sm:$0xff]
        %v214 = vld [vmem:[%s172 + $0x58] sm:$0xff]
        %v215 = vld [vmem:[%s172 + $0x60] sm:$0xff]
        %v216 = vld [vmem:[%s172 + $0x68] sm:$0xff]
        %v217 = vld [vmem:[%s172 + $0x70] sm:$0xff]
        %v218 = vld [vmem:[%s172 + $0x78] sm:$0xff]
        %v219 = vld [vmem:[%s1] sm:$0x1]
        %v221 = vlaneseq
        %v222 = vshrl.u32 %v221, 7
        %v223 = vsub.s32 0, %v222
        %v224 = vrot.slane %v219, %v223
        %v226 = vmul.f32 %v203, %v224
        %v227 = vmul.f32 %v204, %v224
        %v228 = vmul.f32 %v205, %v224
        %v229 = vmul.f32 %v206, %v224
        %v230 = vmul.f32 %v207, %v224
        %v231 = vmul.f32 %v208, %v224
        %v232 = vmul.f32 %v209, %v224
        %v233 = vmul.f32 %v210, %v224
        %v234 = vmul.f32 %v211, %v224
        %v235 = vmul.f32 %v212, %v224
        %v236 = vmul.f32 %v213, %v224
        %v237 = vmul.f32 %v214, %v224
        %v238 = vmul.f32 %v215, %v224
        %v239 = vmul.f32 %v216, %v224
        %v240 = vmul.f32 %v217, %v224
        %v241 = vmul.f32 %v218, %v224
        %242 = vadd.xlane.f32.xlu0 %v226
        %v243 = vpop.xlane.xlu0 %242
        %244 = vadd.xlane.f32.xlu0 %v227
        %v245 = vpop.xlane.xlu0 %244
        %246 = vadd.xlane.f32.xlu0 %v228
        %v247 = vpop.xlane.xlu0 %246
        %248 = vadd.xlane.f32.xlu0 %v229
        %v249 = vpop.xlane.xlu0 %248
        %250 = vadd.xlane.f32.xlu0 %v230
        %v251 = vpop.xlane.xlu0 %250
        %252 = vadd.xlane.f32.xlu0 %v231
        %v253 = vpop.xlane.xlu0 %252
        %254 = vadd.xlane.f32.xlu0 %v232
        %v255 = vpop.xlane.xlu0 %254
        %256 = vadd.xlane.f32.xlu0 %v233
        %v257 = vpop.xlane.xlu0 %256
        %258 = vadd.xlane.f32.xlu0 %v234
        %v259 = vpop.xlane.xlu0 %258
        %260 = vadd.xlane.f32.xlu0 %v235
        %v261 = vpop.xlane.xlu0 %260
        %262 = vadd.xlane.f32.xlu0 %v236
        %v263 = vpop.xlane.xlu0 %262
        %264 = vadd.xlane.f32.xlu0 %v237
        %v265 = vpop.xlane.xlu0 %264
        %266 = vadd.xlane.f32.xlu0 %v238
        %v267 = vpop.xlane.xlu0 %266
        %268 = vadd.xlane.f32.xlu0 %v239
        %v269 = vpop.xlane.xlu0 %268
        %270 = vadd.xlane.f32.xlu0 %v240
        %v271 = vpop.xlane.xlu0 %270
        %272 = vadd.xlane.f32.xlu0 %v241
        %v273 = vpop.xlane.xlu0 %272
        %v274 = vand.u32 2147483647, %v243
        %v275 = vand.u32 2147483647, %v245
        %v276 = vand.u32 2147483647, %v247
        %v277 = vand.u32 2147483647, %v249
        %v278 = vand.u32 2147483647, %v251
        %v279 = vand.u32 2147483647, %v253
        %v280 = vand.u32 2147483647, %v255
        %v281 = vand.u32 2147483647, %v257
        %v282 = vand.u32 2147483647, %v259
        %v283 = vand.u32 2147483647, %v261
        %v284 = vand.u32 2147483647, %v263
        %v285 = vand.u32 2147483647, %v265
        %v286 = vand.u32 2147483647, %v267
        %v287 = vand.u32 2147483647, %v269
        %v288 = vand.u32 2147483647, %v271
        %v289 = vand.u32 2147483647, %v273
        %v290 = vsub.f32 0.0, %v274
        %v291 = vsub.f32 0.0, %v275
        %v292 = vsub.f32 0.0, %v276
        %v293 = vsub.f32 0.0, %v277
        %v294 = vsub.f32 0.0, %v278
        %v295 = vsub.f32 0.0, %v279
        %v296 = vsub.f32 0.0, %v280
        %v297 = vsub.f32 0.0, %v281
        %v298 = vsub.f32 0.0, %v282
        %v299 = vsub.f32 0.0, %v283
        %v300 = vsub.f32 0.0, %v284
        %v301 = vsub.f32 0.0, %v285
        %v302 = vsub.f32 0.0, %v286
        %v303 = vsub.f32 0.0, %v287
        %v304 = vsub.f32 0.0, %v288
        %v305 = vsub.f32 0.0, %v289
        %v306 = vmul.f32 %v290, 1.442695
        %v307 = vpow.pop %v306
        %v308 = vmul.f32 %v291, 1.442695
        %v309 = vpow.pop %v308
        %v310 = vmul.f32 %v292, 1.442695
        %v311 = vpow.pop %v310
        %v312 = vmul.f32 %v293, 1.442695
        %v313 = vpow.pop %v312
        %v314 = vmul.f32 %v294, 1.442695
        %v315 = vpow.pop %v314
        %v316 = vmul.f32 %v295, 1.442695
        %v317 = vpow.pop %v316
        %v318 = vmul.f32 %v296, 1.442695
        %v319 = vpow.pop %v318
        %v320 = vmul.f32 %v297, 1.442695
        %v321 = vpow.pop %v320
        %v322 = vmul.f32 %v298, 1.442695
        %v323 = vpow.pop %v322
        %v324 = vmul.f32 %v299, 1.442695
        %v325 = vpow.pop %v324
        %v326 = vmul.f32 %v300, 1.442695
        %v327 = vpow.pop %v326
        %v328 = vmul.f32 %v301, 1.442695
        %v329 = vpow.pop %v328
        %v330 = vmul.f32 %v302, 1.442695
        %v331 = vpow.pop %v330
        %v332 = vmul.f32 %v303, 1.442695
        %v333 = vpow.pop %v332
        %v334 = vmul.f32 %v304, 1.442695
        %v335 = vpow.pop %v334
        %v336 = vmul.f32 %v305, 1.442695
        %v337 = vpow.pop %v336
        %vm338 = vcmp.ge.f32.partialorder %v243, 0.0
        %vm339 = vcmp.ge.f32.partialorder %v245, 0.0
        %vm340 = vcmp.ge.f32.partialorder %v247, 0.0
        %vm341 = vcmp.ge.f32.partialorder %v249, 0.0
        %vm342 = vcmp.ge.f32.partialorder %v251, 0.0
        %vm343 = vcmp.ge.f32.partialorder %v253, 0.0
        %vm344 = vcmp.ge.f32.partialorder %v255, 0.0
        %vm345 = vcmp.ge.f32.partialorder %v257, 0.0
        %vm346 = vcmp.ge.f32.partialorder %v259, 0.0
        %vm347 = vcmp.ge.f32.partialorder %v261, 0.0
        %vm348 = vcmp.ge.f32.partialorder %v263, 0.0
        %vm349 = vcmp.ge.f32.partialorder %v265, 0.0
        %vm350 = vcmp.ge.f32.partialorder %v267, 0.0
        %vm351 = vcmp.ge.f32.partialorder %v269, 0.0
        %vm352 = vcmp.ge.f32.partialorder %v271, 0.0
        %vm353 = vcmp.ge.f32.partialorder %v273, 0.0
        %v354 = vsel %vm338, 1.0, %v307
        %v355 = vsel %vm339, 1.0, %v309
        %v356 = vsel %vm340, 1.0, %v311
        %v357 = vsel %vm341, 1.0, %v313
        %v358 = vsel %vm342, 1.0, %v315
        %v359 = vsel %vm343, 1.0, %v317
        %v360 = vsel %vm344, 1.0, %v319
        %v361 = vsel %vm345, 1.0, %v321
        %v362 = vsel %vm346, 1.0, %v323
        %v363 = vsel %vm347, 1.0, %v325
        %v364 = vsel %vm348, 1.0, %v327
        %v365 = vsel %vm349, 1.0, %v329
        %v366 = vsel %vm350, 1.0, %v331
        %v367 = vsel %vm351, 1.0, %v333
        %v368 = vsel %vm352, 1.0, %v335
        %v369 = vsel %vm353, 1.0, %v337
        %v370 = vadd.f32 %v307, 1.0
        %v371 = vadd.f32 %v309, 1.0
        %v372 = vadd.f32 %v311, 1.0
        %v373 = vadd.f32 %v313, 1.0
        %v374 = vadd.f32 %v315, 1.0
        %v375 = vadd.f32 %v317, 1.0
        %v376 = vadd.f32 %v319, 1.0
        %v377 = vadd.f32 %v321, 1.0
        %v378 = vadd.f32 %v323, 1.0
        %v379 = vadd.f32 %v325, 1.0
        %v380 = vadd.f32 %v327, 1.0
        %v381 = vadd.f32 %v329, 1.0
        %v382 = vadd.f32 %v331, 1.0
        %v383 = vadd.f32 %v333, 1.0
        %v384 = vadd.f32 %v335, 1.0
        %v385 = vadd.f32 %v337, 1.0
        %v386 = vrcp.pop %v370
        %v387 = vrcp.pop %v371
        %v388 = vrcp.pop %v372
        %v389 = vrcp.pop %v373
        %v390 = vrcp.pop %v374
        %v391 = vrcp.pop %v375
        %v392 = vrcp.pop %v376
        %v393 = vrcp.pop %v377
        %v394 = vrcp.pop %v378
        %v395 = vrcp.pop %v379
        %v396 = vrcp.pop %v380
        %v397 = vrcp.pop %v381
        %v398 = vrcp.pop %v382
        %v399 = vrcp.pop %v383
        %v400 = vrcp.pop %v384
        %v401 = vrcp.pop %v385
        %v402 = vmul.f32 %v354, %v386
        %v403 = vmul.f32 %v355, %v387
        %v404 = vmul.f32 %v356, %v388
        %v405 = vmul.f32 %v357, %v389
        %v406 = vmul.f32 %v358, %v390
        %v407 = vmul.f32 %v359, %v391
        %v408 = vmul.f32 %v360, %v392
        %v409 = vmul.f32 %v361, %v393
        %v410 = vmul.f32 %v362, %v394
        %v411 = vmul.f32 %v363, %v395
        %v412 = vmul.f32 %v364, %v396
        %v413 = vmul.f32 %v365, %v397
        %v414 = vmul.f32 %v366, %v398
        %v415 = vmul.f32 %v367, %v399
        %v416 = vmul.f32 %v368, %v400
        %v417 = vmul.f32 %v369, %v401
        %418 = vst [vmem:[%s192] sm:$0xff] %v402
        %419 = vst [vmem:[%s192 + $0x8] sm:$0xff] %v403
        %420 = vst [vmem:[%s192 + $0x10] sm:$0xff] %v404
        %421 = vst [vmem:[%s192 + $0x18] sm:$0xff] %v405
        %422 = vst [vmem:[%s192 + $0x20] sm:$0xff] %v406
        %423 = vst [vmem:[%s192 + $0x28] sm:$0xff] %v407
        %424 = vst [vmem:[%s192 + $0x30] sm:$0xff] %v408
        %425 = vst [vmem:[%s192 + $0x38] sm:$0xff] %v409
        %426 = vst [vmem:[%s192 + $0x40] sm:$0xff] %v410
        %427 = vst [vmem:[%s192 + $0x48] sm:$0xff] %v411
        %428 = vst [vmem:[%s192 + $0x50] sm:$0xff] %v412
        %429 = vst [vmem:[%s192 + $0x58] sm:$0xff] %v413
        %430 = vst [vmem:[%s192 + $0x60] sm:$0xff] %v414
        %431 = vst [vmem:[%s192 + $0x68] sm:$0xff] %v415
        %432 = vst [vmem:[%s192 + $0x70] sm:$0xff] %v416
        %433 = vst [vmem:[%s192 + $0x78] sm:$0xff] %v417
        %v434 = vlaneseq
        %v435 = vand.u32 %v434, 127
        %vm436 = vcmp.eq.s32.totalorder %v435, 48
        %v437 = vmul.f32 %v402, %v402
        %v438 = vmul.f32 %v403, %v403
        %v439 = vmul.f32 %v404, %v404
        %v440 = vmul.f32 %v405, %v405
        %v441 = vmul.f32 %v406, %v406
        %v442 = vmul.f32 %v407, %v407
        %v443 = vmul.f32 %v408, %v408
        %v444 = vmul.f32 %v409, %v409
        %v445 = vmul.f32 %v410, %v410
        %v446 = vmul.f32 %v411, %v411
        %v447 = vmul.f32 %v412, %v412
        %v448 = vmul.f32 %v413, %v413
        %v449 = vmul.f32 %v414, %v414
        %v450 = vmul.f32 %v415, %v415
        %v451 = vmul.f32 %v416, %v416
        %v452 = vmul.f32 %v417, %v417
        %v453 = vmul.f32 %v203, %v402
        %v454 = vmul.f32 %v204, %v403
        %v455 = vmul.f32 %v205, %v404
        %v456 = vmul.f32 %v206, %v405
        %v457 = vmul.f32 %v207, %v406
        %v458 = vmul.f32 %v208, %v407
        %v459 = vmul.f32 %v209, %v408
        %v460 = vmul.f32 %v210, %v409
        %v461 = vmul.f32 %v211, %v410
        %v462 = vmul.f32 %v212, %v411
        %v463 = vmul.f32 %v213, %v412
        %v464 = vmul.f32 %v214, %v413
        %v465 = vmul.f32 %v215, %v414
        %v466 = vmul.f32 %v216, %v415
        %v467 = vmul.f32 %v217, %v416
        %v468 = vmul.f32 %v218, %v417
        %v469 = vsel %vm436, %v437, %v453
        %v470 = vsel %vm436, %v438, %v454
        %v471 = vsel %vm436, %v439, %v455
        %v472 = vsel %vm436, %v440, %v456
        %v473 = vsel %vm436, %v441, %v457
        %v474 = vsel %vm436, %v442, %v458
        %v475 = vsel %vm436, %v443, %v459
        %v476 = vsel %vm436, %v444, %v460
        %v477 = vsel %vm436, %v445, %v461
        %v478 = vsel %vm436, %v446, %v462
        %v479 = vsel %vm436, %v447, %v463
        %v480 = vsel %vm436, %v448, %v464
        %v481 = vsel %vm436, %v449, %v465
        %v482 = vsel %vm436, %v450, %v466
        %v483 = vsel %vm436, %v451, %v467
        %v484 = vsel %vm436, %v452, %v468
        %v485 = vpack.c.bf16 %v470, %v469
        %v486 = vpack.c.bf16 %v472, %v471
        %v487 = vpack.c.bf16 %v474, %v473
        %v488 = vpack.c.bf16 %v476, %v475
        %v489 = vpack.c.bf16 %v478, %v477
        %v490 = vpack.c.bf16 %v480, %v479
        %v491 = vpack.c.bf16 %v482, %v481
        %v492 = vpack.c.bf16 %v484, %v483
        %v501 = vunpack.c.l.b16 %v485
        %v502 = vunpack.c.h.b16 %v485
        %v503 = vunpack.c.l.b16 %v486
        %v504 = vunpack.c.h.b16 %v486
        %v505 = vunpack.c.l.b16 %v487
        %v506 = vunpack.c.h.b16 %v487
        %v507 = vunpack.c.l.b16 %v488
        %v508 = vunpack.c.h.b16 %v488
        %v509 = vunpack.c.l.b16 %v489
        %v510 = vunpack.c.h.b16 %v489
        %v511 = vunpack.c.l.b16 %v490
        %v512 = vunpack.c.h.b16 %v490
        %v513 = vunpack.c.l.b16 %v491
        %v514 = vunpack.c.h.b16 %v491
        %v515 = vunpack.c.l.b16 %v492
        %v516 = vunpack.c.h.b16 %v492
        %v517 = vpack.c.b16 %v501, %v501
        %v518 = vpack.c.b16 %v502, %v502
        %v519 = vpack.c.b16 %v503, %v503
        %v520 = vpack.c.b16 %v504, %v504
        %v521 = vpack.c.b16 %v505, %v505
        %v522 = vpack.c.b16 %v506, %v506
        %v523 = vpack.c.b16 %v507, %v507
        %v524 = vpack.c.b16 %v508, %v508
        %v525 = vpack.c.b16 %v509, %v509
        %v526 = vpack.c.b16 %v510, %v510
        %v527 = vpack.c.b16 %v511, %v511
        %v528 = vpack.c.b16 %v512, %v512
        %v529 = vpack.c.b16 %v513, %v513
        %v530 = vpack.c.b16 %v514, %v514
        %v531 = vpack.c.b16 %v515, %v515
        %v532 = vpack.c.b16 %v516, %v516
        %549 = vst [vmem:[%s199] sm:$0xf] %v517
        %550 = vst [vmem:[%s199 + $0x4] sm:$0xf] %v518
        %551 = vst [vmem:[%s199 + $0x8] sm:$0xf] %v519
        %552 = vst [vmem:[%s199 + $0xc] sm:$0xf] %v520
        %553 = vst [vmem:[%s199 + $0x10] sm:$0xf] %v521
        %554 = vst [vmem:[%s199 + $0x14] sm:$0xf] %v522
        %555 = vst [vmem:[%s199 + $0x18] sm:$0xf] %v523
        %556 = vst [vmem:[%s199 + $0x1c] sm:$0xf] %v524
        %557 = vst [vmem:[%s199 + $0x20] sm:$0xf] %v525
        %558 = vst [vmem:[%s199 + $0x24] sm:$0xf] %v526
        %559 = vst [vmem:[%s199 + $0x28] sm:$0xf] %v527
        %560 = vst [vmem:[%s199 + $0x2c] sm:$0xf] %v528
        %561 = vst [vmem:[%s199 + $0x30] sm:$0xf] %v529
        %562 = vst [vmem:[%s199 + $0x34] sm:$0xf] %v530
        %563 = vst [vmem:[%s199 + $0x38] sm:$0xf] %v531
        %564 = vst [vmem:[%s199 + $0x3c] sm:$0xf] %v532
        %s565 = sand.u32 %s79, 1
        %s566 = scalar_lea.sflag [#allocation4], %s565
        %s567 = sand.u32 %s79, 1
        %s568 = smul.addr %s567, 128
        %s569 = scalar_lea.vmem [#allocation5], %s568
        %s570 = sand.u32 %s105, 1
        %s571 = scalar_lea.sflag [#allocation7], %s570
        %s572 = sand.u32 %s105, 1
        %s573 = smul.addr %s572, 64
        %s574 = scalar_lea.vmem [#allocation6], %s573
        // Predicated region
        $region33: #{tpu_custom_call.1} parent=27 // pred_check
          %p575 = pneg %p89
        $region34: #{tpu_custom_call.1} parent=27 // pred_check_branch
          %577 = sbr.rel (%p575) target = $region36
        $region35: #{tpu_custom_call.1} parent=27 // pred_region
          %s578 = smul.u32 16, %s24
          %s580 = ssub.s32 2048, 2048
          %581 = vsyncadd %s566, %s580
          %s582 = smul.addr %s578, 128
          %s583 = scalar_lea.hbm %s2, %s582
          %s584 = sshll.u32 %s569, 4
          %s585 = int_to_ptr.vmem [resolvable:$true] %s584
          %590 = dma.vmem_to_hbm [thread:$0]  %s585, 2048, %s583, %s566, 128, 128, 8
        $region36: #{tpu_custom_call.1} parent=27 // pred_fallthru
          _
        // Predicated region
        $region37: #{tpu_custom_call.1} parent=27 // pred_check
          %p591 = pneg %p115
        $region38: #{tpu_custom_call.1} parent=27 // pred_check_branch
          %593 = sbr.rel (%p591) target = $region40
        $region39: #{tpu_custom_call.1} parent=27 // pred_region
          %s594 = smul.u32 16, %s24
          %s596 = ssub.s32 1024, 1024
          %597 = vsyncadd %s571, %s596
          %s598 = smul.addr %s594, 64
          %s599 = scalar_lea.hbm %s3, %s598
          %s600 = sshll.u32 %s574, 4
          %s601 = int_to_ptr.vmem [resolvable:$true] %s600
          %606 = dma.vmem_to_hbm [thread:$0]  %s601, 1024, %s599, %s571, 64, 64, 4
        $region40: #{tpu_custom_call.1} parent=27 // pred_fallthru
          _
      $region28: #{tpu_custom_call.1} parent=5 // pred_fallthru
        _
      %p607 = scmp.le.s32.totalorder 2, %s19
      // Predicated region
      $region41: #{tpu_custom_call.1} parent=5 // pred_check
        %p608 = pneg %p607
      $region42: #{tpu_custom_call.1} parent=5 // pred_check_branch
        %610 = sbr.rel (%p608) target = $region44
      $region43: #{tpu_custom_call.1} parent=5 // pred_region
        %s611 = ssub.s32 %s19, 2
        // Predicated region
        $region45: #{tpu_custom_call.1} parent=43 // pred_check
          %p612 = pneg %p95
        $region46: #{tpu_custom_call.1} parent=43 // pred_check_branch
          %614 = sbr.rel (%p612) target = $region48
        $region47: #{tpu_custom_call.1} parent=43 // pred_region
          %s615 = sand.u32 %s80, 1
          %s616 = scalar_lea.sflag [#allocation4], %s615
          %s617 = sand.u32 %s80, 1
          %s618 = smul.addr %s617, 128
          %s619 = scalar_lea.vmem [#allocation5], %s618
          %620 = dma.done %s616, 2048
        $region48: #{tpu_custom_call.1} parent=43 // pred_fallthru
          _
        // Predicated region
        $region49: #{tpu_custom_call.1} parent=43 // pred_check
          %p621 = pneg %p121
        $region50: #{tpu_custom_call.1} parent=43 // pred_check_branch
          %623 = sbr.rel (%p621) target = $region52
        $region51: #{tpu_custom_call.1} parent=43 // pred_region
          %s624 = sand.u32 %s106, 1
          %s625 = scalar_lea.sflag [#allocation7], %s624
          %s626 = sand.u32 %s106, 1
          %s627 = smul.addr %s626, 64
          %s628 = scalar_lea.vmem [#allocation6], %s627
          %629 = dma.done %s625, 1024
        $region52: #{tpu_custom_call.1} parent=43 // pred_fallthru
          _
      $region44: #{tpu_custom_call.1} parent=5 // pred_fallthru
        _
    $region6: #{tpu_custom_call.1} parent=1 // loop_footer
      %s23 = sadd.s32 1, %s19
    $region7: #{tpu_custom_call.1} parent=1 // loop_footer_branch
      %18 = sbr.rel target = $region3
    $region8: #{tpu_custom_call.1} parent=1 // loop_exit
      _
    %630 = vsyncpa [#allocation3], 1
    %s631 = scalar_lea.sflag [#allocation3], 1
    %632 = vsyncpa %s631, 1
    %633 = vsyncpa [#allocation4], 1
    %s634 = scalar_lea.sflag [#allocation4], 1
    %635 = vsyncpa %s634, 1
    %636 = vsyncpa [#allocation7], 1
    %s637 = scalar_lea.sflag [#allocation7], 1
    %638 = vsyncpa %s637, 1

</llo_original>
